<compile_context>
chip_gen: v6e
topology: v6e:2x2x1
jax: 0.10.0
libtpu: 0.0.40
codegen_flags: <defaults>
</compile_context>

<pallas_src>
import math

import jax
import jax.numpy as jnp
from jax.experimental import pallas as pl
from jax.experimental.pallas import tpu as pltpu

_MB = 1024 * 1024


def _patch_embed_kernel(x_ref, w_ref, pe_ref, o_ref):
    # x_ref : (tile_m, patch_len)  flattened-patches tile (compute dtype, e.g. bf16)
    # w_ref : (patch_len, d_model) value_embedding weight (transposed vs torch layout)
    # pe_ref: (tile_m, d_model)    positional embedding pre-tiled to one M tile
    # o_ref : (tile_m, d_model)
    y = jnp.dot(x_ref[...], w_ref[...], preferred_element_type=jnp.float32)
    o_ref[...] = (y + pe_ref[...].astype(jnp.float32)).astype(o_ref.dtype)


def make_positional_embedding(d_model, max_len=5000):
    position = jnp.arange(0, max_len, dtype=jnp.float32)[:, None]           # (max_len, 1)
    div_term = jnp.exp(
        jnp.arange(0, d_model, 2, dtype=jnp.float32) * -(math.log(10000.0) / d_model)
    )                                                                        # (ceil(d/2),)
    pe = jnp.zeros((max_len, d_model), dtype=jnp.float32)
    pe = pe.at[:, 0::2].set(jnp.sin(position * div_term))
    pe = pe.at[:, 1::2].set(jnp.cos(position * div_term)[:, : d_model // 2])
    return pe                                                                # (max_len, d_model)


def _cdiv(a, b):
    return -(-a // b)


def _round_up(x, m):
    return ((x + m - 1) // m) * m


def _hw_params():
    """Generation-aware VMEM budget / tile targets.

    v5e / v6e: 1 TensorCore, 128 MiB physical VMEM -> big budget, min_grid=1.
    v7x      : 2 TensorCores, 64 MiB physical VMEM -> capped budget, min_grid=2.
    Falls back to conservative settings if the hardware query is unavailable.
    """
    vmem_cap = None
    try:
        vmem_cap = int(pltpu.get_tpu_info().vmem_capacity_bytes)
    except Exception:
        vmem_cap = None
    if vmem_cap is None:
        return dict(vmem_budget_bytes=20 * _MB, vmem_limit_bytes=32 * _MB,
                    target_rows=4096, min_grid=2)
    if vmem_cap <= 64 * _MB:                                    # v7x-class part
        return dict(vmem_budget_bytes=24 * _MB, vmem_limit_bytes=48 * _MB,
                    target_rows=4096, min_grid=2)
    return dict(vmem_budget_bytes=48 * _MB, vmem_limit_bytes=64 * _MB,
                target_rows=8192, min_grid=1)                   # v5e / v6e


def _choose_tile_bn(BN, P, patch_len, d_model, *, in_itemsize, out_itemsize,
                    pe_itemsize, target_rows, vmem_budget_bytes, min_grid):
    """Pick how many (batch, var) groups go into one M tile.

    tile_m = tile_bn * P must be a multiple of 8 (sublane alignment) and of P (keeps
    the pre-tiled PE phase-aligned); it need NOT divide B*n_vars — the grid uses cdiv
    and the last tile is zero-padded.  VMEM footprints are rounded up to the physical
    (8, 128) tile granularity so skinny buffers are counted honestly.
    """
    align = 8 // math.gcd(P, 8)                 # tile_bn granularity so tile_m % 8 == 0

    def buf_bytes(rows, cols, itemsize):
        return _round_up(rows, 8) * _round_up(cols, 128) * itemsize

    def vmem_bytes(tbn):
        rows = tbn * P
        return (2 * buf_bytes(rows, patch_len, in_itemsize)        # patches, 2 buffers
                + 2 * buf_bytes(rows, d_model, out_itemsize)       # output,  2 buffers
                + 2 * buf_bytes(rows, d_model, pe_itemsize)        # resident PE (2 conservatively)
                + 2 * buf_bytes(patch_len, d_model, in_itemsize))  # resident weight

    row_cap = max(target_rows, align * P)
    max_tbn = max(align, min(_round_up(BN, align), _round_up(row_cap // P, align)))
    cands = [t for t in range(align, max_tbn + 1, align)
             if t * P <= row_cap and vmem_bytes(t) <= vmem_budget_bytes]
    if not cands:
        cands = [align]

    # Cost model: total rows processed (incl. zero-padded tail) plus a per-step
    # pipeline-overhead equivalent (~0.35us ~ 1k output rows at HBM roofline), with a
    # penalty when the grid is too short to feed every TensorCore.
    overhead_rows = 1024

    def cost(t):
        g = _cdiv(BN, t)
        rows = g * t * P + g * overhead_rows
        if g < min_grid:
            rows *= min_grid / g
        return rows

    return min(cands, key=lambda t: (cost(t), -t))


def patch_embedding_forward(x, weight, pe_table, patch_len, stride, padding,
                            compute_dtype=jnp.bfloat16, out_dtype=jnp.bfloat16):
    """Forward pass of Autoformer's PatchEmbedding.

    x        : [B, n_vars, L]
    weight   : [d_model, patch_len]  (torch nn.Linear layout, bias=False)
    pe_table : [max_len, d_model]    sinusoidal table
    Returns (embedded [B*n_vars, num_patches, d_model] in out_dtype, n_vars).

    compute_dtype feeds the MXU (bf16 fast path); accumulation and the PE add are f32.
    Pass float32/float32 for exact parity with the torch module.  d_model should be a
    multiple of 128 for lane-dense stores (still correct otherwise, just slower).
    """
    B, n_vars, L = x.shape
    d_model = weight.shape[0]
    BN = B * n_vars

    # --- glue: ReplicationPad1d((0, padding)) ---
    pad_right = jnp.repeat(x[..., -1:], padding, axis=-1)
    x_pad = jnp.concatenate([x, pad_right], axis=-1).astype(compute_dtype)   # [B, nv, L+pad]

    # --- glue: unfold(dim=-1, size=patch_len, step=stride), flattened into one GEMM ---
    # TODO(synk): this gather still materializes the patch matrix in HBM (see header).
    P = (L + padding - patch_len) // stride + 1
    idx = jnp.arange(P)[:, None] * stride + jnp.arange(patch_len)[None, :]   # (P, patch_len)
    patches_flat = x_pad[..., idx].reshape(BN * P, patch_len)                # (M, patch_len)

    w_t = weight.T.astype(compute_dtype)                                     # (patch_len, d_model)

    hw = _hw_params()
    in_it = jnp.dtype(compute_dtype).itemsize
    out_it = jnp.dtype(out_dtype).itemsize
    pe_dtype = out_dtype
    pe_it = jnp.dtype(pe_dtype).itemsize

    tile_bn = _choose_tile_bn(
        BN, P, patch_len, d_model,
        in_itemsize=in_it, out_itemsize=out_it, pe_itemsize=pe_it,
        target_rows=hw["target_rows"], vmem_budget_bytes=hw["vmem_budget_bytes"],
        min_grid=hw["min_grid"])
    tile_m = tile_bn * P
    grid_n = _cdiv(BN, tile_bn)
    M = BN * P
    M_pad = grid_n * tile_m
    if M_pad != M:
        patches_flat = jnp.pad(patches_flat, ((0, M_pad - M), (0, 0)))

    # PE pattern repeats every P rows; keep exactly one M tile of it VMEM-resident.
    pe_tile = jnp.tile(pe_table[:P, :].astype(pe_dtype), (tile_bn, 1))       # (tile_m, d_model)

    cost = pl.CostEstimate(
        flops=int(2 * M_pad * patch_len * d_model),
        transcendentals=0,
        bytes_accessed=int(M_pad * patch_len * in_it + patch_len * d_model * in_it
                           + tile_m * d_model * pe_it + M_pad * d_model * out_it))

    out_flat = pl.pallas_call(
        _patch_embed_kernel,
        out_shape=jax.ShapeDtypeStruct((M_pad, d_model), out_dtype),
        grid=(grid_n,),
        in_specs=[
            pl.BlockSpec((tile_m, patch_len), lambda i: (i, 0)),
            pl.BlockSpec((patch_len, d_model), lambda i: (0, 0)),   # VMEM-resident weight
            pl.BlockSpec((tile_m, d_model), lambda i: (0, 0)),      # VMEM-resident PE tile
        ],
        out_specs=pl.BlockSpec((tile_m, d_model), lambda i: (i, 0)),
        compiler_params=pltpu.CompilerParams(
            dimension_semantics=("parallel",),
            vmem_limit_bytes=hw["vmem_limit_bytes"]),
        cost_estimate=cost,
    )(patches_flat, w_t, pe_tile)

    # TODO(synk): nn.Dropout is a no-op in eval mode; training-mode dropout would need
    # pltpu.prng_seed / pltpu.prng_random_bits masking inside the kernel.
    out = out_flat[:M].reshape(BN, P, d_model)
    return out, n_vars


if __name__ == "__main__":
    # Small shapes consistent with the module's forward.  d_model = 128 keeps the
    # output tile lane-dense (full-width stores), matching realistic configs.
    B, n_vars, L = 2, 4, 16
    d_model, patch_len, stride, padding, dropout = 128, 8, 4, 4, 0.1

    key = jax.random.PRNGKey(0)
    kx, kw = jax.random.split(key)
    x = jax.random.normal(kx, (B, n_vars, L), dtype=jnp.float32)
    # Deterministic init for Linear(patch_len, d_model, bias=False) (torch layout).
    weight = 0.02 * jax.random.normal(kw, (d_model, patch_len), dtype=jnp.float32)
    pe_table = make_positional_embedding(d_model)

    # Pure-JAX reference (f32).
    pad_right = jnp.repeat(x[..., -1:], padding, axis=-1)
    x_pad = jnp.concatenate([x, pad_right], axis=-1)
    P = (L + padding - patch_len) // stride + 1
    idx = jnp.arange(P)[:, None] * stride + jnp.arange(patch_len)[None, :]
    patches = x_pad[..., idx].reshape(B * n_vars, P, patch_len)
    ref = jnp.einsum("bpk,dk->bpd", patches, weight) + pe_table[None, :P, :]

    # Fast path: bf16 operands + bf16 output (f32 accumulate inside the kernel).
    out_bf16, nv = patch_embedding_forward(x, weight, pe_table, patch_len, stride, padding)
    out_bf16 = jax.block_until_ready(out_bf16)
    assert out_bf16.shape == (B * n_vars, P, d_model)
    assert out_bf16.dtype == jnp.bfloat16
    assert nv == n_vars
    assert jnp.allclose(out_bf16.astype(jnp.float32), ref, atol=3e-2, rtol=3e-2)

    # Exact-parity path: f32 everywhere (matches the torch module numerics).
    out_f32, _ = patch_embedding_forward(x, weight, pe_table, patch_len, stride, padding,
                                         compute_dtype=jnp.float32, out_dtype=jnp.float32)
    out_f32 = jax.block_until_ready(out_f32)
    assert out_f32.shape == (B * n_vars, P, d_model)
    assert jnp.allclose(out_f32, ref, atol=1e-4, rtol=1e-4)

    print("KERNEL_OK")
</pallas_src>

<mosaic_0001>
module attributes {stable_mosaic.version = 11 : i64} {
  func.func @_patch_embed_kernel(%arg0: i32, %arg1: memref<16x8xbf16, #tpu.memory_space<vmem>>, %arg2: memref<8x128xbf16, #tpu.memory_space<vmem>>, %arg3: memref<16x128xbf16, #tpu.memory_space<vmem>>, %arg4: memref<16x128xbf16, #tpu.memory_space<vmem>>) attributes {dimension_semantics = [#tpu.dimension_semantics<parallel>], iteration_bounds = array<i64: 2>, scalar_prefetch = 0 : i64, scratch_operands = 0 : i64, tpu.core_type = #tpu.core_type<tc>, window_params = [{transform_indices = @transform_0, window_bounds = array<i64: 16, 8>}, {pipeline_mode = #tpu.pipeline_mode<synchronous>, transform_indices = @transform_1, window_bounds = array<i64: 8, 128>}, {pipeline_mode = #tpu.pipeline_mode<synchronous>, transform_indices = @transform_2, window_bounds = array<i64: 16, 128>}, {transform_indices = @transform_3, window_bounds = array<i64: 16, 128>}]} {
    %c0 = arith.constant 0 : index
    %c0_0 = arith.constant 0 : index
    %0 = vector.load %arg1[%c0, %c0_0] : memref<16x8xbf16, #tpu.memory_space<vmem>>, vector<16x8xbf16>
    %c0_1 = arith.constant 0 : index
    %c0_2 = arith.constant 0 : index
    %1 = vector.load %arg2[%c0_1, %c0_2] : memref<8x128xbf16, #tpu.memory_space<vmem>>, vector<8x128xbf16>
    %cst = arith.constant dense<0.000000e+00> : vector<16x128xf32>
    %2 = tpu.matmul %0, %1, %cst {dimension_numbers = #tpu.dot_dimension_numbers<[1], [0], [0], [1], [0, 0, 1, 1], [], []>} : vector<16x8xbf16>, vector<8x128xbf16>, vector<16x128xf32> -> vector<16x128xf32>
    %c0_3 = arith.constant 0 : index
    %c0_4 = arith.constant 0 : index
    %3 = vector.load %arg3[%c0_3, %c0_4] : memref<16x128xbf16, #tpu.memory_space<vmem>>, vector<16x128xbf16>
    %4 = arith.extf %3 : vector<16x128xbf16> to vector<16x128xf32>
    %5 = arith.addf %2, %4 : vector<16x128xf32>
    %6 = arith.truncf %5 : vector<16x128xf32> to vector<16x128xbf16>
    %c0_5 = arith.constant 0 : index
    %c0_6 = arith.constant 0 : index
    %7 = vector.load %arg4[%c0_5, %c0_6] : memref<16x128xbf16, #tpu.memory_space<vmem>>, vector<16x128xbf16>
    tpu.vector_store %arg4[%c0_5, %c0_6], %6 {strides = array<i32>} : memref<16x128xbf16, #tpu.memory_space<vmem>>, vector<16x128xbf16>,
    return
  }
  func.func @transform_0(%arg0: i32) -> (i32, i32) {
    %c0_i32 = arith.constant 0 : i32
    %c0_i32_0 = arith.constant 0 : i32
    return %arg0, %c0_i32 : i32, i32
  }
  func.func @transform_1(%arg0: i32) -> (i32, i32) {
    %c0_i32 = arith.constant 0 : i32
    %c0_i32_0 = arith.constant 0 : i32
    %c0_i32_1 = arith.constant 0 : i32
    return %c0_i32, %c0_i32_0 : i32, i32
  }
  func.func @transform_2(%arg0: i32) -> (i32, i32) {
    %c0_i32 = arith.constant 0 : i32
    %c0_i32_0 = arith.constant 0 : i32
    %c0_i32_1 = arith.constant 0 : i32
    return %c0_i32, %c0_i32_0 : i32, i32
  }
  func.func @transform_3(%arg0: i32) -> (i32, i32) {
    %c0_i32 = arith.constant 0 : i32
    %c0_i32_0 = arith.constant 0 : i32
    return %arg0, %c0_i32 : i32, i32
  }
}

</mosaic_0001>

<llo_original>
// kernel: tpu_custom_call.1
$region0: #{tpu_custom_call.1}
  #allocation0 [shape = 'u32[]', space=smem, size = 0x4, offset = 0x4, fixed_abs, tag = 'smem constant byte address 0x4 - core index']
  #allocation1 [shape = 'u32[144,128]{1,0:T(1,128)}', space=vmem, size = 0x12000, scoped, tag = 'internal scratch']
  %s0 = inlined_call_operand.vmem [shape: bf16[32,8], index: 0, kind: input, shape index: {}]
  %s1 = inlined_call_operand.vmem [shape: bf16[8,128], index: 1, kind: input, shape index: {}]
  %s2 = inlined_call_operand.vmem [shape: bf16[16,128], index: 2, kind: input, shape index: {}]
  %s3 = inlined_call_operand.hbm [shape: bf16[32,128], index: 3, kind: output, shape index: {}]
  %s4 = sld [smem:[#allocation0]]
  $region45: #{tpu_custom_call.1} parent=0
    _
  %s6 = ssub.s32 1, %s4
  %s7 = scalar_select 0, %s6, %s4
  $region1: #{tpu_custom_call.1} parent=0
    #allocation2 [shape = 'u8[8192]{0}', space=vmem, size = 0x2000, scoped, tag = 'output window, operand 0']
    #allocation3 [shape = 's32[2]{0}', space=sflag, size = 0x8, scoped, tag = 'scoped memory for tpu_custom_call.1']
    %8 = vsyncpa [#allocation3], 0
    %s9 = scalar_lea.sflag [#allocation3], 1
    %10 = vsyncpa %s9, 0
    loop: start=0, step=1, limit=4
    $region2: #{tpu_custom_call.1} parent=1 // loop_pre_header
      _
    $region3: #{tpu_custom_call.1} parent=1 // loop_header
      %s12 = sphi 0, %s16
      %p13 = scmp.ge.s32.totalorder %s12, 4
      %s22 = sphi 0, %s24
      %s25 = sphi 0, %s22
      %s26 = sphi 0, %s25
      %s42 = sphi 0, %s26
      %s46 = sphi 0, %s46
      %s48 = sphi 0, %s46
      %s49 = sphi 0, %s48
      %s63 = sphi 0, %s49
      %s67 = sphi 0, %s67
      %s69 = sphi 0, %s67
      %s70 = sphi 0, %s69
      %s84 = sphi 0, %s70
      %s90 = sphi 0, %s92
      %s93 = sphi 0, %s90
      %s94 = sphi 0, %s93
      %s110 = sphi 0, %s94
    $region4: #{tpu_custom_call.1} parent=1 // loop_header_branch
      %15 = sbr.rel (%p13) target = $region8
    $region5: #{tpu_custom_call.1} parent=1 // loop_body
      %s17 = ssub.s32 %s12, 1
      %s18 = ssub.s32 %s12, 2
      %s19 = sadd.s32 %s12, 1
      %s20 = ssub.s32 %s12, %s19
      %p21 = scmp.eq.s32.totalorder %s20, 0
      %s23 = sadd.s32 %s22, 1
      %s24 = scalar_select %p21, %s22, %s23
      %p27 = pneg %p21
      %p28 = scmp.eq.s32.totalorder %s12, 1
      %p29 = por %p27, %p28
      %p30 = scmp.ne.s32.totalorder %s22, %s25
      %p31 = scmp.eq.s32.totalorder %s12, 0
      %p32 = por %p30, %p31
      %p33 = scmp.ne.s32.totalorder %s22, %s25
      %p34 = scmp.eq.s32.totalorder %s17, 1
      %p35 = por %p33, %p34
      %p36 = scmp.ne.s32.totalorder %s25, %s26
      %p37 = scmp.eq.s32.totalorder %s17, 0
      %p38 = por %p36, %p37
      %p39 = scmp.ne.s32.totalorder %s25, %s26
      %p40 = scmp.eq.s32.totalorder %s18, 1
      %p41 = por %p39, %p40
      %p43 = scmp.ne.s32.totalorder %s26, %s42
      %p44 = scmp.eq.s32.totalorder %s18, 0
      %p45 = por %p43, %p44
      %s47 = sadd.s32 %s46, 1
      %p50 = scmp.eq.s32.totalorder %s12, 1
      %p51 = scmp.ne.s32.totalorder %s46, %s48
      %p52 = scmp.eq.s32.totalorder %s12, 0
      %p53 = por %p51, %p52
      %p54 = scmp.ne.s32.totalorder %s46, %s48
      %p55 = scmp.eq.s32.totalorder %s17, 1
      %p56 = por %p54, %p55
      %p57 = scmp.ne.s32.totalorder %s48, %s49
      %p58 = scmp.eq.s32.totalorder %s17, 0
      %p59 = por %p57, %p58
      %p60 = scmp.ne.s32.totalorder %s48, %s49
      %p61 = scmp.eq.s32.totalorder %s18, 1
      %p62 = por %p60, %p61
      %p64 = scmp.ne.s32.totalorder %s49, %s63
      %p65 = scmp.eq.s32.totalorder %s18, 0
      %p66 = por %p64, %p65
      %s68 = sadd.s32 %s67, 1
      %p71 = scmp.eq.s32.totalorder %s12, 1
      %p72 = scmp.ne.s32.totalorder %s67, %s69
      %p73 = scmp.eq.s32.totalorder %s12, 0
      %p74 = por %p72, %p73
      %p75 = scmp.ne.s32.totalorder %s67, %s69
      %p76 = scmp.eq.s32.totalorder %s17, 1
      %p77 = por %p75, %p76
      %p78 = scmp.ne.s32.totalorder %s69, %s70
      %p79 = scmp.eq.s32.totalorder %s17, 0
      %p80 = por %p78, %p79
      %p81 = scmp.ne.s32.totalorder %s69, %s70
      %p82 = scmp.eq.s32.totalorder %s18, 1
      %p83 = por %p81, %p82
      %p85 = scmp.ne.s32.totalorder %s70, %s84
      %p86 = scmp.eq.s32.totalorder %s18, 0
      %p87 = por %p85, %p86
      %s88 = ssub.s32 %s12, %s19
      %p89 = scmp.eq.s32.totalorder %s88, 0
      %s91 = sadd.s32 %s90, 1
      %s92 = scalar_select %p89, %s90, %s91
      %p95 = pneg %p89
      %p96 = scmp.eq.s32.totalorder %s12, 1
      %p97 = por %p95, %p96
      %p98 = scmp.ne.s32.totalorder %s90, %s93
      %p99 = scmp.eq.s32.totalorder %s12, 0
      %p100 = por %p98, %p99
      %p101 = scmp.ne.s32.totalorder %s90, %s93
      %p102 = scmp.eq.s32.totalorder %s17, 1
      %p103 = por %p101, %p102
      %p104 = scmp.ne.s32.totalorder %s93, %s94
      %p105 = scmp.eq.s32.totalorder %s17, 0
      %p106 = por %p104, %p105
      %p107 = scmp.ne.s32.totalorder %s93, %s94
      %p108 = scmp.eq.s32.totalorder %s18, 1
      %p109 = por %p107, %p108
      %p111 = scmp.ne.s32.totalorder %s94, %s110
      %p112 = scmp.eq.s32.totalorder %s18, 0
      %p113 = por %p111, %p112
      %p114 = scmp.le.s32.totalorder 1, %s12
      %p115 = scmp.lt.s32.totalorder %s12, 3
      %p116 = pnand %p114, %p115
      %p117 = pneg %p116
      // Predicated region
      $region9: #{tpu_custom_call.1} parent=5 // pred_check
        _
      $region10: #{tpu_custom_call.1} parent=5 // pred_check_branch
        %119 = sbr.rel (%p116) target = $region12
      $region11: #{tpu_custom_call.1} parent=5 // pred_region
        %s120 = ssub.s32 %s12, 1
        // Predicated region
        $region13: #{tpu_custom_call.1} parent=11 // pred_check
          %p121 = pneg %p59
        $region14: #{tpu_custom_call.1} parent=11 // pred_check_branch
          %123 = sbr.rel (%p121) target = $region16
        $region15: #{tpu_custom_call.1} parent=11 // pred_region
          _
        $region16: #{tpu_custom_call.1} parent=11 // pred_fallthru
          _
        // Predicated region
        $region17: #{tpu_custom_call.1} parent=11 // pred_check
          %p124 = pneg %p80
        $region18: #{tpu_custom_call.1} parent=11 // pred_check_branch
          %126 = sbr.rel (%p124) target = $region20
        $region19: #{tpu_custom_call.1} parent=11 // pred_region
          _
        $region20: #{tpu_custom_call.1} parent=11 // pred_fallthru
          _
      $region12: #{tpu_custom_call.1} parent=5 // pred_fallthru
        _
      %p127 = scmp.lt.s32.totalorder %s12, 2
      // Predicated region
      $region21: #{tpu_custom_call.1} parent=5 // pred_check
        %p128 = pneg %p127
      $region22: #{tpu_custom_call.1} parent=5 // pred_check_branch
        %130 = sbr.rel (%p128) target = $region24
      $region23: #{tpu_custom_call.1} parent=5 // pred_region
        // Predicated region
        $region25: #{tpu_custom_call.1} parent=23 // pred_check
          %p131 = pneg %p32
        $region26: #{tpu_custom_call.1} parent=23 // pred_check_branch
          %133 = sbr.rel (%p131) target = $region28
        $region27: #{tpu_custom_call.1} parent=23 // pred_region
          %s134 = smul.u32 2, %s12
          %p135 = scmp.lt.s32.totalorder %s134, 3
          %s136 = scalar_select %p135, %s134, 3
          %s137 = smul.addr %s136, 4
          %s138 = scalar_lea.vmem %s0, %s137
          %s139 = smul.u32 2, %s12
        $region28: #{tpu_custom_call.1} parent=23 // pred_fallthru
          _
      $region24: #{tpu_custom_call.1} parent=5 // pred_fallthru
        _
      %p140 = scmp.le.s32.totalorder 1, %s12
      %p141 = scmp.lt.s32.totalorder %s12, 3
      %p142 = pnand %p140, %p141
      %p143 = pneg %p142
      // Predicated region
      $region29: #{tpu_custom_call.1} parent=5 // pred_check
        _
      $region30: #{tpu_custom_call.1} parent=5 // pred_check_branch
        %145 = sbr.rel (%p142) target = $region32
      $region31: #{tpu_custom_call.1} parent=5 // pred_region
        %s146 = ssub.s32 %s12, 1
        %s147 = smul.u32 2, %s17
        %p148 = scmp.lt.s32.totalorder %s147, 3
        %s149 = scalar_select %p148, %s147, 3
        %s150 = smul.addr %s149, 4
        %s151 = scalar_lea.vmem %s0, %s150
        %p152 = pneg %p38
        %p153 = pneg %p35
        %p154 = pneg %p59
        %p155 = pneg %p56
        %p156 = pneg %p80
        %p157 = pneg %p77
        %p158 = pneg %p106
        %p159 = pneg %p103
        %s160 = sand.u32 %s93, 1
        %s161 = scalar_lea.sflag [#allocation3], %s160
        %s162 = sand.u32 %s93, 1
        %s163 = smul.addr %s162, 8
        %s164 = scalar_lea.vmem [#allocation2], %s163
        %s165 = smul.u32 2, %s17
        %p166 = scmp.lt.s32.totalorder %s165, 3
        %s167 = scalar_select %p166, %s165, 3
        %s168 = smul.addr %s167, 4
        %s169 = scalar_lea.vmem %s0, %s168
        %s170 = smul.u32 2, %s17
        %s171 = smul.u32 2, %s17
        %v173 = vld [vmem:[%s169] sm:$0xf]
        %v174 = vld [vmem:[%s169 + $0x4] sm:$0xf]
        %v175 = vld [vmem:[%s1] sm:$0xf]
        %v176 = vld [vmem:[%s2] sm:$0xf]
        %v177 = vld [vmem:[%s2 + $0x4] sm:$0xf]
        %v178 = vunpack.c.l.bf16 %v176
        %v179 = vunpack.c.l.bf16 %v177
        %v182 = vunpack.c.l.b16 %v173
        %v183 = vunpack.c.l.b16 %v174
        %v184 = vpack.c.b16 %v183, %v182
        %vm185 = vcmask 64512
        %v187 = vsel %vm185, %v184, 0
        %vm189 = vcmask 1043456
        %v191 = vsel %vm189, %v175, 0
        %193 = vmatprep.subr.bf16.mxu0 0
        %194 = vmatpush1.bf16.msra.mxu0 0
        %195 = vmatprep.subr.bf16.mxu0 0
        %196 = vmatpush1.bf16.msra.mxu0 0
        %197 = vmatprep.subr.bf16.mxu0 0
        %198 = vmatpush1.bf16.msra.mxu0 0
        %199 = vmatprep.subr.bf16.mxu0 0
        %200 = vmatpush1.bf16.msra.mxu0 0
        %201 = vmatprep.subr.bf16.mxu0 0
        %202 = vmatpush1.bf16.msra.mxu0 0
        %203 = vmatprep.subr.bf16.mxu0 0
        %204 = vmatpush1.bf16.msra.mxu0 0
        %205 = vmatprep.subr.bf16.mxu0 0
        %206 = vmatpush1.bf16.msra.mxu0 0
        %207 = vmatprep.subr.bf16.mxu0 0
        %208 = vmatpush1.bf16.msra.mxu0 %v191
        %209 = vmatprep.subr.bf16.mxu0 0
        %210 = vmatpush2.bf16.msra.mxu0 0
        %211 = vmatprep.subr.bf16.mxu0 0
        %212 = vmatpush2.bf16.msra.mxu0 0
        %213 = vmatprep.subr.bf16.mxu0 0
        %214 = vmatpush2.bf16.msra.mxu0 0
        %215 = vmatprep.subr.bf16.mxu0 0
        %216 = vmatpush2.bf16.msra.mxu0 0
        %217 = vmatprep.subr.bf16.mxu0 0
        %218 = vmatpush2.bf16.msra.mxu0 0
        %219 = vmatprep.subr.bf16.mxu0 0
        %220 = vmatpush2.bf16.msra.mxu0 0
        %221 = vmatprep.subr.bf16.mxu0 0
        %222 = vmatpush2.bf16.msra.mxu0 0
        %223 = vmatprep.subr.bf16.mxu0 0
        %224 = vmatpush2.bf16.msra.mxu0 0
        %225 = vmatprep.mubr.bf16.mxu0 0
        %226 = vmatmul.mubr.bf16.gmra.mxu0 %v187
        %v227 = vpop.f32.mrf.mxu0
        %v228 = vadd.f32 %v178, %v227
        %v229 = vpop.f32.mrf.mxu0
        %v230 = vpop.f32.mrf.mxu0
        %v231 = vadd.f32 %v179, %v230
        %v232 = vpop.f32.mrf.mxu0
        %233 = vdwg.mxu0
        %v234 = vpack.c.bf16 %v231, %v228
        %v236 = vunpack.c.l.b16 %v234
        %v237 = vunpack.c.h.b16 %v234
        %v238 = vpack.c.b16 %v236, %v236
        %v239 = vpack.c.b16 %v237, %v237
        %242 = vst [vmem:[%s164] sm:$0xf] %v238
        %243 = vst [vmem:[%s164 + $0x4] sm:$0xf] %v239
        %s244 = sand.u32 %s93, 1
        %s245 = scalar_lea.sflag [#allocation3], %s244
        %s246 = sand.u32 %s93, 1
        %s247 = smul.addr %s246, 8
        %s248 = scalar_lea.vmem [#allocation2], %s247
        // Predicated region
        $region33: #{tpu_custom_call.1} parent=31 // pred_check
          %p249 = pneg %p103
        $region34: #{tpu_custom_call.1} parent=31 // pred_check_branch
          %251 = sbr.rel (%p249) target = $region36
        $region35: #{tpu_custom_call.1} parent=31 // pred_region
          %s252 = smul.u32 2, %s17
          %s254 = ssub.s32 128, 128
          %255 = vsyncadd %s245, %s254
          %s256 = smul.addr %s252, 64
          %s257 = scalar_lea.hbm %s3, %s256
          %s258 = sshll.u32 %s248, 4
          %s259 = int_to_ptr.vmem [resolvable:$true] %s258
          %264 = dma.vmem_to_hbm [thread:$0]  %s259, 128, %s257, %s245, 64, 64, 4
        $region36: #{tpu_custom_call.1} parent=31 // pred_fallthru
          _
      $region32: #{tpu_custom_call.1} parent=5 // pred_fallthru
        _
      %p265 = scmp.le.s32.totalorder 2, %s12
      // Predicated region
      $region37: #{tpu_custom_call.1} parent=5 // pred_check
        %p266 = pneg %p265
      $region38: #{tpu_custom_call.1} parent=5 // pred_check_branch
        %268 = sbr.rel (%p266) target = $region40
      $region39: #{tpu_custom_call.1} parent=5 // pred_region
        %s269 = ssub.s32 %s12, 2
        // Predicated region
        $region41: #{tpu_custom_call.1} parent=39 // pred_check
          %p270 = pneg %p109
        $region42: #{tpu_custom_call.1} parent=39 // pred_check_branch
          %272 = sbr.rel (%p270) target = $region44
        $region43: #{tpu_custom_call.1} parent=39 // pred_region
          %s273 = sand.u32 %s94, 1
          %s274 = scalar_lea.sflag [#allocation3], %s273
          %s275 = sand.u32 %s94, 1
          %s276 = smul.addr %s275, 8
          %s277 = scalar_lea.vmem [#allocation2], %s276
          %278 = dma.done %s274, 128
        $region44: #{tpu_custom_call.1} parent=39 // pred_fallthru
          _
      $region40: #{tpu_custom_call.1} parent=5 // pred_fallthru
        _
    $region6: #{tpu_custom_call.1} parent=1 // loop_footer
      %s16 = sadd.s32 1, %s12
    $region7: #{tpu_custom_call.1} parent=1 // loop_footer_branch
      %11 = sbr.rel target = $region3
    $region8: #{tpu_custom_call.1} parent=1 // loop_exit
      _
    %279 = vsyncpa [#allocation3], 1
    %s280 = scalar_lea.sflag [#allocation3], 1
    %281 = vsyncpa %s280, 1

</llo_original>
